<compile_context>
chip_gen: v5e
topology: v5e:2x2
jax: 0.10.0
libtpu: 0.0.40
codegen_flags: <defaults>
</compile_context>

<pallas_src>
import jax
import jax.numpy as jnp
import numpy as np
from jax.experimental import pallas as pl
from jax.experimental.pallas import tpu as pltpu

LRELU_SLOPE = 0.1
K = 3                        # kernel_size
DILATIONS = (1, 3)
HIST = 8                     # carried history rows: multiple of the 8-row sublane
                             # tile and >= (K - 1) * max(DILATIONS) = 6
# Tap read offsets inside the (HIST + TT, CP) conv-input buffers.
_OFF1 = tuple(HIST - (K - 1) * DILATIONS[0] + k * DILATIONS[0] for k in range(K))  # (6, 7, 8)
_OFF2 = tuple(HIST - (K - 1) * DILATIONS[1] + k * DILATIONS[1] for k in range(K))  # (2, 5, 8)


def _round_up(v, m):
    return ((v + m - 1) // m) * m


def _leaky(v):
    return jnp.where(v > 0, v, LRELU_SLOPE * v)


def _resblock_kernel(x_ref, w1_ref, b1_ref, w2_ref, b2_ref, o_ref,
                     buf1_ref, buf2_ref):
    """One (batch, T-tile) grid step.

    x_ref : (1, TT, CP) input tile (channels lane-dense).
    w*_ref: (K*CP, CP) fused im2col weights (taps stacked along the contraction
            dim), already in the MXU operand dtype (bf16 by default).
    b*_ref: (1, CP) f32 bias.
    buf*  : (HIST + TT, CP) f32 persistent scratch holding the post-leaky conv
            input; rows [0:HIST] carry the causal history across T tiles.
    """
    t = pl.program_id(1)
    TT = x_ref.shape[1]
    CP = x_ref.shape[2]
    mdt = w1_ref.dtype                      # MXU operand dtype (bf16 or f32)

    @pl.when(t == 0)
    def _():                                # causal zero padding (leaky(0) == 0)
        buf1_ref[0:HIST, :] = jnp.zeros((HIST, CP), buf1_ref.dtype)
        buf2_ref[0:HIST, :] = jnp.zeros((HIST, CP), buf2_ref.dtype)

    x = x_ref[0].astype(jnp.float32)        # (TT, CP) residual path, f32

    # ---- stage 1: leaky -> causal dilated conv (d = 1) -> + residual --------
    buf1_ref[HIST:HIST + TT, :] = _leaky(x)                     # aligned store
    im1 = jnp.concatenate(
        [buf1_ref[o:o + TT, :].astype(mdt) for o in _OFF1], axis=1)  # (TT, 3*CP)
    x1 = (jnp.dot(im1, w1_ref[...], preferred_element_type=jnp.float32)
          + b1_ref[...] + x)                                    # (TT, CP) f32

    # ---- stage 2: leaky -> causal dilated conv (d = 3) -> + residual --------
    buf2_ref[HIST:HIST + TT, :] = _leaky(x1)
    im2 = jnp.concatenate(
        [buf2_ref[o:o + TT, :].astype(mdt) for o in _OFF2], axis=1)
    y = (jnp.dot(im2, w2_ref[...], preferred_element_type=jnp.float32)
         + b2_ref[...] + x1)

    # Carry the last HIST rows of each conv input to the next T tile.
    # Both source (row TT, TT % 8 == 0) and destination (row 0) are sublane
    # aligned, so these are cheap vreg copies.
    buf1_ref[0:HIST, :] = buf1_ref[TT:TT + HIST, :]
    buf2_ref[0:HIST, :] = buf2_ref[TT:TT + HIST, :]

    o_ref[0] = y.astype(o_ref.dtype)


def _physical_vmem_bytes():
    try:
        info = pltpu.get_tpu_info()
        v = getattr(info, "vmem_capacity_bytes", None)
        if v:
            return int(v)
    except Exception:
        pass
    return 64 * 1024 * 1024      # conservative fallback (v7x has the smallest VMEM)


def _batch_dim_semantics(batch):
    """CORE_PARALLEL on multi-TensorCore chips (v7x) so both TCs are used;
    plain 'parallel' everywhere else (near-no-op on single-TC v5e/v6e)."""
    if batch < 2:
        return "parallel"
    try:
        kind = jax.devices()[0].device_kind.lower()
    except Exception:
        kind = ""
    if "v7" in kind or "7x" in kind:
        return getattr(pltpu, "CORE_PARALLEL", "parallel")
    return "parallel"


def resblock_forward_btc(x_btc, w1, b1, w2, b2, *, t_tile=None,
                         matmul_dtype=jnp.bfloat16):
    """x_btc: (B, T, C).  w*: (C, C, K) effective (weight-normed) conv weights,
    b*: (C,).  Returns (B, T, C).  This is the layout a production model should
    feed directly (no NCW transposes)."""
    B, T, C = x_btc.shape
    CP = _round_up(C, 128)                  # lane-dense channel dim
    in_bytes = jnp.dtype(x_btc.dtype).itemsize
    md_bytes = jnp.dtype(matmul_dtype).itemsize

    phys_vmem = _physical_vmem_bytes()
    if t_tile is None:                      # bigger tiles on 128-MiB parts (v5e/v6e)
        t_tile = 1024 if phys_vmem >= 96 * 1024 * 1024 else 512
    TT = max(HIST, _round_up(min(int(t_tile), _round_up(T, 8)), 8))

    def footprint(tt):                      # rough VMEM bytes for tile length tt
        return (4 * tt * CP * in_bytes              # in/out blocks, double-buffered
                + 4 * K * CP * CP * md_bytes        # two fused weights, double-buffered
                + 2 * (HIST + tt) * CP * 4          # persistent conv-input scratches
                + tt * CP * (6 * md_bytes + 6 * 4)  # im2col + f32 temporaries
                + 8 * CP * 4)

    budget = phys_vmem * 3 // 4
    while footprint(TT) > budget and TT > HIST:
        TT = max(HIST, _round_up(TT // 2, 8))
    vmem_limit = int(min(max(int(1.5 * footprint(TT)), 32 * 1024 * 1024), budget))

    T_pad = _round_up(T, TT)
    NT = T_pad // TT

    # TODO(synk): for C < 128 a batch-into-lanes packing would avoid the large
    # zero-padding of the MXU contraction/output dims; not implemented here.
    x_p = jnp.pad(x_btc, ((0, 0), (0, T_pad - T), (0, CP - C)))

    def prep(w, b):
        # (C_out, C_in, K) -> fused (K*CP, CP): rows [k*CP:(k+1)*CP] = w[:, :, k].T
        wp = jnp.pad(w, ((0, CP - C), (0, CP - C), (0, 0)))
        wf = jnp.transpose(wp, (2, 1, 0)).reshape(K * CP, CP)
        bp = jnp.pad(b, (0, CP - C)).reshape(1, CP)
        return wf.astype(matmul_dtype), bp.astype(jnp.float32)

    w1f, b1p = prep(w1, b1)
    w2f, b2p = prep(w2, b2)

    def run(batch_sem):
        t_sem = ("arbitrary" if isinstance(batch_sem, str)
                 else getattr(pltpu, "ARBITRARY", "arbitrary"))
        return pl.pallas_call(
            _resblock_kernel,
            out_shape=jax.ShapeDtypeStruct((B, T_pad, CP), x_btc.dtype),
            grid_spec=pltpu.PrefetchScalarGridSpec(
                num_scalar_prefetch=0,
                grid=(B, NT),
                in_specs=[
                    # TODO(synk): add pipeline_mode=pl.Buffered(3) on this spec
                    # only if profiling shows the input DMA exposed at small C.
                    pl.BlockSpec((1, TT, CP), lambda b, t: (b, t, 0)),
                    pl.BlockSpec((K * CP, CP), lambda b, t: (0, 0)),
                    pl.BlockSpec((1, CP), lambda b, t: (0, 0)),
                    pl.BlockSpec((K * CP, CP), lambda b, t: (0, 0)),
                    pl.BlockSpec((1, CP), lambda b, t: (0, 0)),
                ],
                out_specs=pl.BlockSpec((1, TT, CP), lambda b, t: (b, t, 0)),
                scratch_shapes=[
                    pltpu.VMEM((HIST + TT, CP), jnp.float32),  # conv1 input + hist
                    pltpu.VMEM((HIST + TT, CP), jnp.float32),  # conv2 input + hist
                ],
            ),
            compiler_params=pltpu.CompilerParams(
                # T must stay sequential on one core: the causal history carry
                # depends on it.  Only the batch axis may be core-sharded.
                dimension_semantics=(batch_sem, t_sem),
                vmem_limit_bytes=vmem_limit),
        )(x_p, w1f, b1p, w2f, b2p)

    batch_sem = _batch_dim_semantics(B)
    try:
        out = run(batch_sem)
    except Exception:
        if batch_sem == "parallel":
            raise
        out = run("parallel")   # graceful fallback if CORE_PARALLEL is unsupported

    return out[:, :T, :C]


def resblock_forward(x_ncw, w1, b1, w2, b2, *, t_tile=None,
                     matmul_dtype=jnp.bfloat16):
    """PyTorch-parity NCW adapter.  NOTE: these two transposes are full HBM
    passes over the activation; in a real model keep the (B, T, C) layout
    end-to-end and call resblock_forward_btc directly."""
    x_btc = jnp.transpose(x_ncw, (0, 2, 1))
    out = resblock_forward_btc(x_btc, w1, b1, w2, b2,
                               t_tile=t_tile, matmul_dtype=matmul_dtype)
    return jnp.transpose(out, (0, 2, 1))


# ----------------------------------------------------------------------------
# reference + test
# ----------------------------------------------------------------------------
def _weight_norm(v, g):
    # PyTorch weight_norm (dim=0): w[co] = g[co] * v[co] / ||v[co]||_2
    norm = jnp.sqrt(jnp.sum(v * v, axis=(1, 2), keepdims=True))
    return g[:, None, None] * v / norm


def _ref_resblock(x, params):
    # Pure-JAX reference (NCW), mirrors the PyTorch forward exactly.
    out = x
    for (w, b, d) in params:
        xt = jnp.where(out > 0, out, LRELU_SLOPE * out)
        pad = (K - 1) * d
        xt_p = jnp.pad(xt, ((0, 0), (0, 0), (pad, 0)))
        y = jax.lax.conv_general_dilated(
            xt_p, w, window_strides=(1,), padding="VALID",
            rhs_dilation=(d,),
            dimension_numbers=("NCH", "OIH", "NCH"))
        y = y + b[None, :, None]
        out = y + out
    return out


def _make_params(key, C):
    kv1, kb1, kv2, kb2 = jax.random.split(key, 4)
    v1 = jax.random.normal(kv1, (C, C, K), jnp.float32) * 0.01
    g1 = jnp.sqrt(jnp.sum(v1 * v1, axis=(1, 2)))
    b1 = jax.random.normal(kb1, (C,), jnp.float32) * 0.01
    v2 = jax.random.normal(kv2, (C, C, K), jnp.float32) * 0.01
    g2 = jnp.sqrt(jnp.sum(v2 * v2, axis=(1, 2)))
    b2 = jax.random.normal(kb2, (C,), jnp.float32) * 0.01
    return _weight_norm(v1, g1), b1, _weight_norm(v2, g2), b2


if __name__ == "__main__":
    key = jax.random.PRNGKey(0)
    k1, k2, kp1, kp2 = jax.random.split(key, 4)

    # Config A: multiple T tiles (exercises the VMEM history carry), C < 128,
    # f32-exact MXU path, native (B, T, C) layout.
    B, C, T = 2, 32, 64
    x_btc = jax.random.normal(k1, (B, T, C), jnp.float32)
    w1, b1, w2, b2 = _make_params(kp1, C)
    ref_a = _ref_resblock(jnp.transpose(x_btc, (0, 2, 1)),
                          [(w1, b1, DILATIONS[0]), (w2, b2, DILATIONS[1])])
    ref_a_btc = np.asarray(jnp.transpose(ref_a, (0, 2, 1)))

    out_a = jax.block_until_ready(
        resblock_forward_btc(x_btc, w1, b1, w2, b2, t_tile=16,
                             matmul_dtype=jnp.float32))
    np.testing.assert_allclose(np.asarray(out_a), ref_a_btc, rtol=1e-5, atol=1e-5)

    # Config A': same data through the default bf16-operand MXU path
    # (f32 accumulation) -> looser tolerance.
    out_a16 = jax.block_until_ready(
        resblock_forward_btc(x_btc, w1, b1, w2, b2, t_tile=16))
    np.testing.assert_allclose(np.asarray(out_a16), ref_a_btc,
                               rtol=2e-2, atol=2e-2)

    # Config B: PyTorch-parity NCW adapter, single T tile, unaligned C and T.
    B2, C2, T2 = 1, 48, 50
    x2 = jax.random.normal(k2, (B2, C2, T2), jnp.float32)
    w1b, b1b, w2b, b2b = _make_params(kp2, C2)
    out_b = jax.block_until_ready(
        resblock_forward(x2, w1b, b1b, w2b, b2b, matmul_dtype=jnp.float32))
    ref_b = _ref_resblock(x2, [(w1b, b1b, DILATIONS[0]), (w2b, b2b, DILATIONS[1])])
    np.testing.assert_allclose(np.asarray(out_b), np.asarray(ref_b),
                               rtol=1e-5, atol=1e-5)

    print("KERNEL_OK")
</pallas_src>

<mosaic_0001>
module attributes {stable_mosaic.version = 11 : i64} {
  func.func @_resblock_kernel(%arg0: i32, %arg1: i32, %arg2: memref<1x16x128xf32, #tpu.memory_space<vmem>>, %arg3: memref<384x128xf32, #tpu.memory_space<vmem>>, %arg4: memref<1x128xf32, #tpu.memory_space<vmem>>, %arg5: memref<384x128xf32, #tpu.memory_space<vmem>>, %arg6: memref<1x128xf32, #tpu.memory_space<vmem>>, %arg7: memref<1x16x128xf32, #tpu.memory_space<vmem>>, %arg8: memref<24x128xf32, #tpu.memory_space<vmem>>, %arg9: memref<24x128xf32, #tpu.memory_space<vmem>>) attributes {dimension_semantics = [#tpu.dimension_semantics<parallel>, #tpu.dimension_semantics<arbitrary>], iteration_bounds = array<i64: 2, 4>, scalar_prefetch = 0 : i64, scratch_operands = 2 : i64, tpu.core_type = #tpu.core_type<tc>, window_params = [{transform_indices = @transform_0, window_bounds = array<i64: 1, 16, 128>}, {pipeline_mode = #tpu.pipeline_mode<synchronous>, transform_indices = @transform_1, window_bounds = array<i64: 384, 128>}, {pipeline_mode = #tpu.pipeline_mode<synchronous>, transform_indices = @transform_2, window_bounds = array<i64: 1, 128>}, {pipeline_mode = #tpu.pipeline_mode<synchronous>, transform_indices = @transform_3, window_bounds = array<i64: 384, 128>}, {pipeline_mode = #tpu.pipeline_mode<synchronous>, transform_indices = @transform_4, window_bounds = array<i64: 1, 128>}, {transform_indices = @transform_5, window_bounds = array<i64: 1, 16, 128>}]} {
    %c0_i32 = arith.constant 0 : i32
    %0 = arith.cmpi eq, %arg1, %c0_i32 : i32
    %1 = arith.extui %0 : i1 to i32
    %c0_i32_0 = arith.constant 0 : i32
    %2 = arith.cmpi ne, %1, %c0_i32_0 : i32
    scf.if %2 {
      %cst_37 = arith.constant 0.000000e+00 : f32
      %44 = vector.broadcast %cst_37 : f32 to vector<8x128xf32>
      %c0_38 = arith.constant 0 : index
      %c0_39 = arith.constant 0 : index
      %45 = vector.load %arg8[%c0_38, %c0_39] : memref<24x128xf32, #tpu.memory_space<vmem>>, vector<8x128xf32>
      tpu.vector_store %arg8[%c0_38, %c0_39], %44 {strides = array<i32>} : memref<24x128xf32, #tpu.memory_space<vmem>>, vector<8x128xf32>,
      %cst_40 = arith.constant 0.000000e+00 : f32
      %46 = vector.broadcast %cst_40 : f32 to vector<8x128xf32>
      %c0_41 = arith.constant 0 : index
      %c0_42 = arith.constant 0 : index
      %47 = vector.load %arg9[%c0_41, %c0_42] : memref<24x128xf32, #tpu.memory_space<vmem>>, vector<8x128xf32>
      tpu.vector_store %arg9[%c0_41, %c0_42], %46 {strides = array<i32>} : memref<24x128xf32, #tpu.memory_space<vmem>>, vector<8x128xf32>,
    } else {
    }
    %c0 = arith.constant 0 : index
    %c0_1 = arith.constant 0 : index
    %c0_2 = arith.constant 0 : index
    %3 = vector.load %arg2[%c0, %c0_1, %c0_2] : memref<1x16x128xf32, #tpu.memory_space<vmem>>, vector<1x16x128xf32>
    %4 = vector.shape_cast %3 : vector<1x16x128xf32> to vector<16x128xf32>
    %cst = arith.constant 0.000000e+00 : f32
    %5 = vector.broadcast %cst : f32 to vector<16x128xf32>
    %6 = arith.cmpf ogt, %4, %5 : vector<16x128xf32>
    %cst_3 = arith.constant 1.000000e-01 : f32
    %7 = vector.broadcast %cst_3 : f32 to vector<16x128xf32>
    %8 = arith.mulf %7, %4 : vector<16x128xf32>
    %9 = arith.select %6, %4, %8 : vector<16x128xi1>, vector<16x128xf32>
    %c8 = arith.constant 8 : index
    %c0_4 = arith.constant 0 : index
    %10 = vector.load %arg8[%c8, %c0_4] : memref<24x128xf32, #tpu.memory_space<vmem>>, vector<16x128xf32>
    tpu.vector_store %arg8[%c8, %c0_4], %9 {strides = array<i32>} : memref<24x128xf32, #tpu.memory_space<vmem>>, vector<16x128xf32>,
    %c6 = arith.constant 6 : index
    %c0_5 = arith.constant 0 : index
    %11 = vector.load %arg8[%c6, %c0_5] : memref<24x128xf32, #tpu.memory_space<vmem>>, vector<16x128xf32>
    %c7 = arith.constant 7 : index
    %c0_6 = arith.constant 0 : index
    %12 = vector.load %arg8[%c7, %c0_6] : memref<24x128xf32, #tpu.memory_space<vmem>>, vector<16x128xf32>
    %c8_7 = arith.constant 8 : index
    %c0_8 = arith.constant 0 : index
    %13 = vector.load %arg8[%c8_7, %c0_8] : memref<24x128xf32, #tpu.memory_space<vmem>>, vector<16x128xf32>
    %14 = tpu.concatenate %11, %12, %13 in 1 : vector<16x128xf32>, vector<16x128xf32>, vector<16x128xf32> -> vector<16x384xf32>
    %c0_9 = arith.constant 0 : index
    %c0_10 = arith.constant 0 : index
    %15 = vector.load %arg3[%c0_9, %c0_10] : memref<384x128xf32, #tpu.memory_space<vmem>>, vector<384x128xf32>
    %cst_11 = arith.constant dense<0.000000e+00> : vector<16x128xf32>
    %16 = tpu.matmul %14, %15, %cst_11 {dimension_numbers = #tpu.dot_dimension_numbers<[1], [0], [0], [1], [0, 0, 1, 1], [], []>} : vector<16x384xf32>, vector<384x128xf32>, vector<16x128xf32> -> vector<16x128xf32>
    %c0_12 = arith.constant 0 : index
    %c0_13 = arith.constant 0 : index
    %17 = vector.load %arg4[%c0_12, %c0_13] : memref<1x128xf32, #tpu.memory_space<vmem>>, vector<1x128xf32>
    %18 = vector.broadcast %17 : vector<1x128xf32> to vector<16x128xf32>
    %19 = arith.addf %16, %18 : vector<16x128xf32>
    %20 = arith.addf %19, %4 : vector<16x128xf32>
    %cst_14 = arith.constant 0.000000e+00 : f32
    %21 = vector.broadcast %cst_14 : f32 to vector<16x128xf32>
    %22 = arith.cmpf ogt, %20, %21 : vector<16x128xf32>
    %cst_15 = arith.constant 1.000000e-01 : f32
    %23 = vector.broadcast %cst_15 : f32 to vector<16x128xf32>
    %24 = arith.mulf %23, %20 : vector<16x128xf32>
    %25 = arith.select %22, %20, %24 : vector<16x128xi1>, vector<16x128xf32>
    %c8_16 = arith.constant 8 : index
    %c0_17 = arith.constant 0 : index
    %26 = vector.load %arg9[%c8_16, %c0_17] : memref<24x128xf32, #tpu.memory_space<vmem>>, vector<16x128xf32>
    tpu.vector_store %arg9[%c8_16, %c0_17], %25 {strides = array<i32>} : memref<24x128xf32, #tpu.memory_space<vmem>>, vector<16x128xf32>,
    %c2 = arith.constant 2 : index
    %c0_18 = arith.constant 0 : index
    %27 = vector.load %arg9[%c2, %c0_18] : memref<24x128xf32, #tpu.memory_space<vmem>>, vector<16x128xf32>
    %c5 = arith.constant 5 : index
    %c0_19 = arith.constant 0 : index
    %28 = vector.load %arg9[%c5, %c0_19] : memref<24x128xf32, #tpu.memory_space<vmem>>, vector<16x128xf32>
    %c8_20 = arith.constant 8 : index
    %c0_21 = arith.constant 0 : index
    %29 = vector.load %arg9[%c8_20, %c0_21] : memref<24x128xf32, #tpu.memory_space<vmem>>, vector<16x128xf32>
    %30 = tpu.concatenate %27, %28, %29 in 1 : vector<16x128xf32>, vector<16x128xf32>, vector<16x128xf32> -> vector<16x384xf32>
    %c0_22 = arith.constant 0 : index
    %c0_23 = arith.constant 0 : index
    %31 = vector.load %arg5[%c0_22, %c0_23] : memref<384x128xf32, #tpu.memory_space<vmem>>, vector<384x128xf32>
    %cst_24 = arith.constant dense<0.000000e+00> : vector<16x128xf32>
    %32 = tpu.matmul %30, %31, %cst_24 {dimension_numbers = #tpu.dot_dimension_numbers<[1], [0], [0], [1], [0, 0, 1, 1], [], []>} : vector<16x384xf32>, vector<384x128xf32>, vector<16x128xf32> -> vector<16x128xf32>
    %c0_25 = arith.constant 0 : index
    %c0_26 = arith.constant 0 : index
    %33 = vector.load %arg6[%c0_25, %c0_26] : memref<1x128xf32, #tpu.memory_space<vmem>>, vector<1x128xf32>
    %34 = vector.broadcast %33 : vector<1x128xf32> to vector<16x128xf32>
    %35 = arith.addf %32, %34 : vector<16x128xf32>
    %36 = arith.addf %35, %20 : vector<16x128xf32>
    %c16 = arith.constant 16 : index
    %c0_27 = arith.constant 0 : index
    %37 = vector.load %arg8[%c16, %c0_27] : memref<24x128xf32, #tpu.memory_space<vmem>>, vector<8x128xf32>
    %c0_28 = arith.constant 0 : index
    %c0_29 = arith.constant 0 : index
    %38 = vector.load %arg8[%c0_28, %c0_29] : memref<24x128xf32, #tpu.memory_space<vmem>>, vector<8x128xf32>
    tpu.vector_store %arg8[%c0_28, %c0_29], %37 {strides = array<i32>} : memref<24x128xf32, #tpu.memory_space<vmem>>, vector<8x128xf32>,
    %c16_30 = arith.constant 16 : index
    %c0_31 = arith.constant 0 : index
    %39 = vector.load %arg9[%c16_30, %c0_31] : memref<24x128xf32, #tpu.memory_space<vmem>>, vector<8x128xf32>
    %c0_32 = arith.constant 0 : index
    %c0_33 = arith.constant 0 : index
    %40 = vector.load %arg9[%c0_32, %c0_33] : memref<24x128xf32, #tpu.memory_space<vmem>>, vector<8x128xf32>
    tpu.vector_store %arg9[%c0_32, %c0_33], %39 {strides = array<i32>} : memref<24x128xf32, #tpu.memory_space<vmem>>, vector<8x128xf32>,
    %c0_34 = arith.constant 0 : index
    %c0_35 = arith.constant 0 : index
    %c0_36 = arith.constant 0 : index
    %41 = vector.load %arg7[%c0_34, %c0_35, %c0_36] : memref<1x16x128xf32, #tpu.memory_space<vmem>>, vector<1x16x128xf32>
    %42 = vector.shape_cast %41 : vector<1x16x128xf32> to vector<16x128xf32>
    %43 = vector.shape_cast %36 : vector<16x128xf32> to vector<1x16x128xf32>
    tpu.vector_store %arg7[%c0_34, %c0_35, %c0_36], %43 {strides = array<i32>} : memref<1x16x128xf32, #tpu.memory_space<vmem>>, vector<1x16x128xf32>,
    return
  }
  func.func @transform_0(%arg0: i32, %arg1: i32) -> (i32, i32, i32) {
    %c0_i32 = arith.constant 0 : i32
    %c0_i32_0 = arith.constant 0 : i32
    return %arg0, %arg1, %c0_i32 : i32, i32, i32
  }
  func.func @transform_1(%arg0: i32, %arg1: i32) -> (i32, i32) {
    %c0_i32 = arith.constant 0 : i32
    %c0_i32_0 = arith.constant 0 : i32
    %c0_i32_1 = arith.constant 0 : i32
    return %c0_i32, %c0_i32_0 : i32, i32
  }
  func.func @transform_2(%arg0: i32, %arg1: i32) -> (i32, i32) {
    %c0_i32 = arith.constant 0 : i32
    %c0_i32_0 = arith.constant 0 : i32
    %c0_i32_1 = arith.constant 0 : i32
    return %c0_i32, %c0_i32_0 : i32, i32
  }
  func.func @transform_3(%arg0: i32, %arg1: i32) -> (i32, i32) {
    %c0_i32 = arith.constant 0 : i32
    %c0_i32_0 = arith.constant 0 : i32
    %c0_i32_1 = arith.constant 0 : i32
    return %c0_i32, %c0_i32_0 : i32, i32
  }
  func.func @transform_4(%arg0: i32, %arg1: i32) -> (i32, i32) {
    %c0_i32 = arith.constant 0 : i32
    %c0_i32_0 = arith.constant 0 : i32
    %c0_i32_1 = arith.constant 0 : i32
    return %c0_i32, %c0_i32_0 : i32, i32
  }
  func.func @transform_5(%arg0: i32, %arg1: i32) -> (i32, i32, i32) {
    %c0_i32 = arith.constant 0 : i32
    %c0_i32_0 = arith.constant 0 : i32
    return %arg0, %arg1, %c0_i32 : i32, i32, i32
  }
}

</mosaic_0001>

<llo_original>
// kernel: tpu_custom_call.1
$region0: #{tpu_custom_call.1}
  #allocation0 [shape = 'u32[]', space=smem, size = 0x4, offset = 0x4, fixed_abs, tag = 'smem constant byte address 0x4 - core index']
  #allocation1 [shape = 'u32[72,128]{1,0:T(1,128)}', space=vmem, size = 0x9000, scoped, tag = 'internal scratch']
  #allocation2 [shape = 'f32[24,128]{1,0:T(8,128)}', space=vmem, size = 0x3000, scoped, tag = 'scratch operand']
  #allocation3 [shape = 'f32[24,128]{1,0:T(8,128)}', space=vmem, size = 0x3000, scoped, tag = 'scratch operand']
  %s0 = inlined_call_operand.hbm [shape: f32[2,64,128], index: 0, kind: input, shape index: {}]
  %s1 = inlined_call_operand.hbm [shape: f32[384,128], index: 1, kind: input, shape index: {}]
  %s2 = inlined_call_operand.vmem [shape: f32[1,128], index: 2, kind: input, shape index: {}]
  %s3 = inlined_call_operand.hbm [shape: f32[384,128], index: 3, kind: input, shape index: {}]
  %s4 = inlined_call_operand.vmem [shape: f32[1,128], index: 4, kind: input, shape index: {}]
  %s5 = inlined_call_operand.hbm [shape: f32[2,64,128], index: 5, kind: output, shape index: {}]
  %s6 = sld [smem:[#allocation0]]
  $region69: #{tpu_custom_call.1} parent=0
    _
  %s8 = ssub.s32 1, %s6
  %s9 = scalar_select 0, %s8, %s6
  $region1: #{tpu_custom_call.1} parent=0
    #allocation4 [shape = 'u8[16384]{0}', space=vmem, size = 0x4000, scoped, tag = 'input window, operand 0']
    #allocation5 [shape = 's32[2]{0}', space=sflag, size = 0x8, scoped, tag = 'scoped memory for tpu_custom_call.1']
    #allocation6 [shape = 's32[2]{0}', space=sflag, size = 0x8, scoped, tag = 'scoped memory for tpu_custom_call.1']
    #allocation7 [shape = 'u8[196608]{0}', space=vmem, size = 0x30000, scoped, tag = 'input window, operand 1, single buffered']
    #allocation8 [shape = 's32[1]{0}', space=sflag, size = 0x4, scoped, tag = 'scoped memory for tpu_custom_call.1']
    #allocation9 [shape = 'u8[196608]{0}', space=vmem, size = 0x30000, scoped, tag = 'input window, operand 3, single buffered']
    #allocation10 [shape = 'u8[16384]{0}', space=vmem, size = 0x4000, scoped, tag = 'output window, operand 0']
    %10 = vsyncpa [#allocation5], 0
    %s11 = scalar_lea.sflag [#allocation5], 1
    %12 = vsyncpa %s11, 0
    %13 = vsyncpa [#allocation8], 0
    %14 = vsyncpa [#allocation6], 0
    %s15 = scalar_lea.sflag [#allocation6], 1
    %16 = vsyncpa %s15, 0
    loop: start=0, step=1, limit=10
    $region2: #{tpu_custom_call.1} parent=1 // loop_pre_header
      _
    $region3: #{tpu_custom_call.1} parent=1 // loop_header
      %s18 = sphi 0, %s22
      %p19 = scmp.ge.s32.totalorder %s18, 10
      %s25 = sphi 0, %s37
      %s26 = sphi 0, %s33
      %s27 = sphi 0, %s25
      %s28 = sphi 0, %s26
      %s29 = sphi 0, %s27
      %s30 = sphi 0, %s28
      %s42 = sphi 0, %s44
      %s45 = sphi 0, %s42
      %s46 = sphi 0, %s45
      %s62 = sphi 0, %s46
      %s66 = sphi 0, %s66
      %s68 = sphi 0, %s66
      %s69 = sphi 0, %s68
      %s83 = sphi 0, %s69
      %s87 = sphi 0, %s87
      %s89 = sphi 0, %s87
      %s90 = sphi 0, %s89
      %s104 = sphi 0, %s90
      %s108 = sphi 0, %s108
      %s110 = sphi 0, %s108
      %s111 = sphi 0, %s110
      %s125 = sphi 0, %s111
      %s129 = sphi 0, %s129
      %s131 = sphi 0, %s129
      %s132 = sphi 0, %s131
      %s146 = sphi 0, %s132
      %s154 = sphi 0, %s156
      %s157 = sphi 0, %s154
      %s158 = sphi 0, %s157
      %s174 = sphi 0, %s158
    $region4: #{tpu_custom_call.1} parent=1 // loop_header_branch
      %21 = sbr.rel (%p19) target = $region8
    $region5: #{tpu_custom_call.1} parent=1 // loop_body
      %s23 = ssub.s32 %s18, 1
      %s24 = ssub.s32 %s18, 2
      %s31 = sadd.s32 1, %s26
      %p32 = scmp.ge.s32.totalorder %s31, 4
      %s33 = scalar_select %p32, 0, %s31
      %s34 = sadd.s32 1, %s25
      %s35 = scalar_select %p32, %s34, %s25
      %p36 = scmp.ge.s32.totalorder %s35, 2
      %s37 = scalar_select %p36, 0, %s35
      %s38 = ssub.s32 %s25, %s37
      %s39 = ssub.s32 %s26, %s33
      %s40 = sor.u32 %s38, %s39
      %p41 = scmp.eq.s32.totalorder %s40, 0
      %s43 = sadd.s32 %s42, 1
      %s44 = scalar_select %p41, %s42, %s43
      %p47 = pneg %p41
      %p48 = scmp.eq.s32.totalorder %s18, 7
      %p49 = por %p47, %p48
      %p50 = scmp.ne.s32.totalorder %s42, %s45
      %p51 = scmp.eq.s32.totalorder %s18, 0
      %p52 = por %p50, %p51
      %p53 = scmp.ne.s32.totalorder %s42, %s45
      %p54 = scmp.eq.s32.totalorder %s23, 7
      %p55 = por %p53, %p54
      %p56 = scmp.ne.s32.totalorder %s45, %s46
      %p57 = scmp.eq.s32.totalorder %s23, 0
      %p58 = por %p56, %p57
      %p59 = scmp.ne.s32.totalorder %s45, %s46
      %p60 = scmp.eq.s32.totalorder %s24, 7
      %p61 = por %p59, %p60
      %p63 = scmp.ne.s32.totalorder %s46, %s62
      %p64 = scmp.eq.s32.totalorder %s24, 0
      %p65 = por %p63, %p64
      %s67 = sadd.s32 %s66, 1
      %p70 = scmp.eq.s32.totalorder %s18, 7
      %p71 = scmp.ne.s32.totalorder %s66, %s68
      %p72 = scmp.eq.s32.totalorder %s18, 0
      %p73 = por %p71, %p72
      %p74 = scmp.ne.s32.totalorder %s66, %s68
      %p75 = scmp.eq.s32.totalorder %s23, 7
      %p76 = por %p74, %p75
      %p77 = scmp.ne.s32.totalorder %s68, %s69
      %p78 = scmp.eq.s32.totalorder %s23, 0
      %p79 = por %p77, %p78
      %p80 = scmp.ne.s32.totalorder %s68, %s69
      %p81 = scmp.eq.s32.totalorder %s24, 7
      %p82 = por %p80, %p81
      %p84 = scmp.ne.s32.totalorder %s69, %s83
      %p85 = scmp.eq.s32.totalorder %s24, 0
      %p86 = por %p84, %p85
      %s88 = sadd.s32 %s87, 1
      %p91 = scmp.eq.s32.totalorder %s18, 7
      %p92 = scmp.ne.s32.totalorder %s87, %s89
      %p93 = scmp.eq.s32.totalorder %s18, 0
      %p94 = por %p92, %p93
      %p95 = scmp.ne.s32.totalorder %s87, %s89
      %p96 = scmp.eq.s32.totalorder %s23, 7
      %p97 = por %p95, %p96
      %p98 = scmp.ne.s32.totalorder %s89, %s90
      %p99 = scmp.eq.s32.totalorder %s23, 0
      %p100 = por %p98, %p99
      %p101 = scmp.ne.s32.totalorder %s89, %s90
      %p102 = scmp.eq.s32.totalorder %s24, 7
      %p103 = por %p101, %p102
      %p105 = scmp.ne.s32.totalorder %s90, %s104
      %p106 = scmp.eq.s32.totalorder %s24, 0
      %p107 = por %p105, %p106
      %s109 = sadd.s32 %s108, 1
      %p112 = scmp.eq.s32.totalorder %s18, 7
      %p113 = scmp.ne.s32.totalorder %s108, %s110
      %p114 = scmp.eq.s32.totalorder %s18, 0
      %p115 = por %p113, %p114
      %p116 = scmp.ne.s32.totalorder %s108, %s110
      %p117 = scmp.eq.s32.totalorder %s23, 7
      %p118 = por %p116, %p117
      %p119 = scmp.ne.s32.totalorder %s110, %s111
      %p120 = scmp.eq.s32.totalorder %s23, 0
      %p121 = por %p119, %p120
      %p122 = scmp.ne.s32.totalorder %s110, %s111
      %p123 = scmp.eq.s32.totalorder %s24, 7
      %p124 = por %p122, %p123
      %p126 = scmp.ne.s32.totalorder %s111, %s125
      %p127 = scmp.eq.s32.totalorder %s24, 0
      %p128 = por %p126, %p127
      %s130 = sadd.s32 %s129, 1
      %p133 = scmp.eq.s32.totalorder %s18, 7
      %p134 = scmp.ne.s32.totalorder %s129, %s131
      %p135 = scmp.eq.s32.totalorder %s18, 0
      %p136 = por %p134, %p135
      %p137 = scmp.ne.s32.totalorder %s129, %s131
      %p138 = scmp.eq.s32.totalorder %s23, 7
      %p139 = por %p137, %p138
      %p140 = scmp.ne.s32.totalorder %s131, %s132
      %p141 = scmp.eq.s32.totalorder %s23, 0
      %p142 = por %p140, %p141
      %p143 = scmp.ne.s32.totalorder %s131, %s132
      %p144 = scmp.eq.s32.totalorder %s24, 7
      %p145 = por %p143, %p144
      %p147 = scmp.ne.s32.totalorder %s132, %s146
      %p148 = scmp.eq.s32.totalorder %s24, 0
      %p149 = por %p147, %p148
      %s150 = ssub.s32 %s25, %s37
      %s151 = ssub.s32 %s26, %s33
      %s152 = sor.u32 %s150, %s151
      %p153 = scmp.eq.s32.totalorder %s152, 0
      %s155 = sadd.s32 %s154, 1
      %s156 = scalar_select %p153, %s154, %s155
      %p159 = pneg %p153
      %p160 = scmp.eq.s32.totalorder %s18, 7
      %p161 = por %p159, %p160
      %p162 = scmp.ne.s32.totalorder %s154, %s157
      %p163 = scmp.eq.s32.totalorder %s18, 0
      %p164 = por %p162, %p163
      %p165 = scmp.ne.s32.totalorder %s154, %s157
      %p166 = scmp.eq.s32.totalorder %s23, 7
      %p167 = por %p165, %p166
      %p168 = scmp.ne.s32.totalorder %s157, %s158
      %p169 = scmp.eq.s32.totalorder %s23, 0
      %p170 = por %p168, %p169
      %p171 = scmp.ne.s32.totalorder %s157, %s158
      %p172 = scmp.eq.s32.totalorder %s24, 7
      %p173 = por %p171, %p172
      %p175 = scmp.ne.s32.totalorder %s158, %s174
      %p176 = scmp.eq.s32.totalorder %s24, 0
      %p177 = por %p175, %p176
      %p178 = scmp.le.s32.totalorder 1, %s18
      %p179 = scmp.lt.s32.totalorder %s18, 9
      %p180 = pnand %p178, %p179
      %p181 = pneg %p180
      // Predicated region
      $region9: #{tpu_custom_call.1} parent=5 // pred_check
        _
      $region10: #{tpu_custom_call.1} parent=5 // pred_check_branch
        %183 = sbr.rel (%p180) target = $region12
      $region11: #{tpu_custom_call.1} parent=5 // pred_region
        %s184 = ssub.s32 %s18, 1
        // Predicated region
        $region13: #{tpu_custom_call.1} parent=11 // pred_check
          %p185 = pneg %p79
        $region14: #{tpu_custom_call.1} parent=11 // pred_check_branch
          %187 = sbr.rel (%p185) target = $region16
        $region15: #{tpu_custom_call.1} parent=11 // pred_region
          %189 = vsyncadd [#allocation8], 0
          %s190 = sshll.u32 %s1, 4
          %s191 = int_to_ptr.hbm [resolvable:$true] %s190
          %s192 = sshll.u32 [#allocation7], 4
          %s193 = int_to_ptr.vmem [resolvable:$true] %s192
          %198 = dma.hbm_to_vmem [thread:$0]  %s191, 6144, %s193, [#allocation8], 128, 128, 8
        $region16: #{tpu_custom_call.1} parent=11 // pred_fallthru
          _
        // Predicated region
        $region17: #{tpu_custom_call.1} parent=11 // pred_check
          %p199 = pneg %p100
        $region18: #{tpu_custom_call.1} parent=11 // pred_check_branch
          %201 = sbr.rel (%p199) target = $region20
        $region19: #{tpu_custom_call.1} parent=11 // pred_region
          _
        $region20: #{tpu_custom_call.1} parent=11 // pred_fallthru
          _
        // Predicated region
        $region21: #{tpu_custom_call.1} parent=11 // pred_check
          %p202 = pneg %p121
        $region22: #{tpu_custom_call.1} parent=11 // pred_check_branch
          %204 = sbr.rel (%p202) target = $region24
        $region23: #{tpu_custom_call.1} parent=11 // pred_region
          %206 = vsyncadd [#allocation8], 0
          %s207 = sshll.u32 %s3, 4
          %s208 = int_to_ptr.hbm [resolvable:$true] %s207
          %s209 = sshll.u32 [#allocation9], 4
          %s210 = int_to_ptr.vmem [resolvable:$true] %s209
          %215 = dma.hbm_to_vmem [thread:$0]  %s208, 6144, %s210, [#allocation8], 128, 128, 8
        $region24: #{tpu_custom_call.1} parent=11 // pred_fallthru
          _
        // Predicated region
        $region25: #{tpu_custom_call.1} parent=11 // pred_check
          %p216 = pneg %p142
        $region26: #{tpu_custom_call.1} parent=11 // pred_check_branch
          %218 = sbr.rel (%p216) target = $region28
        $region27: #{tpu_custom_call.1} parent=11 // pred_region
          _
        $region28: #{tpu_custom_call.1} parent=11 // pred_fallthru
          _
      $region12: #{tpu_custom_call.1} parent=5 // pred_fallthru
        _
      %p219 = scmp.lt.s32.totalorder %s18, 8
      // Predicated region
      $region29: #{tpu_custom_call.1} parent=5 // pred_check
        %p220 = pneg %p219
      $region30: #{tpu_custom_call.1} parent=5 // pred_check_branch
        %222 = sbr.rel (%p220) target = $region32
      $region31: #{tpu_custom_call.1} parent=5 // pred_region
        // Predicated region
        $region33: #{tpu_custom_call.1} parent=31 // pred_check
          %p223 = pneg %p52
        $region34: #{tpu_custom_call.1} parent=31 // pred_check_branch
          %225 = sbr.rel (%p223) target = $region36
        $region35: #{tpu_custom_call.1} parent=31 // pred_region
          %s226 = sand.u32 %s42, 1
          %s227 = scalar_lea.sflag [#allocation5], %s226
          %s228 = sand.u32 %s42, 1
          %s229 = smul.addr %s228, 16
          %s230 = scalar_lea.vmem [#allocation4], %s229
          %s231 = smul.u32 2, %s26
          %233 = vsyncadd %s227, 0
          %s234 = smul.addr %s25, 8
          %s235 = sadd.s32 %s231, %s234
          %s236 = smul.addr %s235, 8
          %s237 = scalar_lea.hbm %s0, %s236
          %s238 = sshll.u32 %s237, 4
          %s239 = int_to_ptr.hbm [resolvable:$true] %s238
          %s240 = sshll.u32 %s230, 4
          %s241 = int_to_ptr.vmem [resolvable:$true] %s240
          %246 = dma.hbm_to_vmem [thread:$0]  %s239, 256, %s241, %s227, 128, 128, 8
        $region36: #{tpu_custom_call.1} parent=31 // pred_fallthru
          _
      $region32: #{tpu_custom_call.1} parent=5 // pred_fallthru
        _
      %p247 = scmp.le.s32.totalorder 1, %s18
      %p248 = scmp.lt.s32.totalorder %s18, 9
      %p249 = pnand %p247, %p248
      %p250 = pneg %p249
      // Predicated region
      $region37: #{tpu_custom_call.1} parent=5 // pred_check
        _
      $region38: #{tpu_custom_call.1} parent=5 // pred_check_branch
        %252 = sbr.rel (%p249) target = $region40
      $region39: #{tpu_custom_call.1} parent=5 // pred_region
        %s253 = ssub.s32 %s18, 1
        %s254 = sand.u32 %s45, 1
        %s255 = scalar_lea.sflag [#allocation5], %s254
        %s256 = sand.u32 %s45, 1
        %s257 = smul.addr %s256, 16
        %s258 = scalar_lea.vmem [#allocation4], %s257
        // Predicated region
        $region41: #{tpu_custom_call.1} parent=39 // pred_check
          %p259 = pneg %p58
        $region42: #{tpu_custom_call.1} parent=39 // pred_check_branch
          %261 = sbr.rel (%p259) target = $region44
        $region43: #{tpu_custom_call.1} parent=39 // pred_region
          %263 = dma.done %s255, 256
        $region44: #{tpu_custom_call.1} parent=39 // pred_fallthru
          _
        // Predicated region
        $region45: #{tpu_custom_call.1} parent=39 // pred_check
          %p264 = pneg %p79
        $region46: #{tpu_custom_call.1} parent=39 // pred_check_branch
          %266 = sbr.rel (%p264) target = $region48
        $region47: #{tpu_custom_call.1} parent=39 // pred_region
          %268 = dma.done [#allocation8], 6144
        $region48: #{tpu_custom_call.1} parent=39 // pred_fallthru
          _
        // Predicated region
        $region49: #{tpu_custom_call.1} parent=39 // pred_check
          %p269 = pneg %p121
        $region50: #{tpu_custom_call.1} parent=39 // pred_check_branch
          %271 = sbr.rel (%p269) target = $region52
        $region51: #{tpu_custom_call.1} parent=39 // pred_region
          %273 = dma.done [#allocation8], 6144
        $region52: #{tpu_custom_call.1} parent=39 // pred_fallthru
          _
        %s274 = sand.u32 %s45, 1
        %s275 = scalar_lea.sflag [#allocation5], %s274
        %s276 = sand.u32 %s45, 1
        %s277 = smul.addr %s276, 16
        %s278 = scalar_lea.vmem [#allocation4], %s277
        %p279 = pneg %p58
        %p280 = pneg %p55
        %p281 = pneg %p79
        %p282 = pneg %p76
        %p283 = pneg %p100
        %p284 = pneg %p97
        %p285 = pneg %p121
        %p286 = pneg %p118
        %p287 = pneg %p142
        %p288 = pneg %p139
        %p289 = pneg %p170
        %p290 = pneg %p167
        %s291 = sand.u32 %s157, 1
        %s292 = scalar_lea.sflag [#allocation6], %s291
        %s293 = sand.u32 %s157, 1
        %s294 = smul.addr %s293, 16
        %s295 = scalar_lea.vmem [#allocation10], %s294
        %s296 = smul.u32 2, %s28
        %s297 = smul.u32 2, %s28
        %p298 = scmp.eq.s32.totalorder %s28, 0
        // Predicated region
        $region53: #{tpu_custom_call.1} parent=39 // pred_check
          %p299 = pneg %p298
        $region54: #{tpu_custom_call.1} parent=39 // pred_check_branch
          %301 = sbr.rel (%p299) target = $region56
        $region55: #{tpu_custom_call.1} parent=39 // pred_region
          %302 = vst [vmem:[#allocation2] sm:$0xff] 0.0
          %303 = vst [vmem:[#allocation3] sm:$0xff] 0.0
        $region56: #{tpu_custom_call.1} parent=39 // pred_fallthru
          _
        %v304 = vld [vmem:[%s258] sm:$0xff]
        %v305 = vld [vmem:[%s258 + $0x8] sm:$0xff]
        %vm306 = vcmp.gt.f32.partialorder %v304, 0.0
        %vm307 = vcmp.gt.f32.partialorder %v305, 0.0
        %v308 = vmul.f32 %v304, 0.1
        %v309 = vmul.f32 %v305, 0.1
        %v310 = vsel %vm306, %v304, %v308
        %v311 = vsel %vm307, %v305, %v309
        %312 = vst [vmem:[#allocation2 + $0x8] sm:$0xff] %v310
        %313 = vst [vmem:[#allocation2 + $0x10] sm:$0xff] %v311
        %v314 = vld [vmem:[#allocation2 + $0x6] sm:$0xff]
        %v315 = vld [vmem:[#allocation2 + $0xe] sm:$0xff]
        %v316 = vld [vmem:[#allocation2 + $0x7] sm:$0xff]
        %v317 = vld [vmem:[#allocation2 + $0xf] sm:$0xff]
        %v318 = vld [vmem:[#allocation2 + $0x8] sm:$0xff]
        %v319 = vld [vmem:[#allocation2 + $0x10] sm:$0xff]
        %v320 = vld [vmem:[#allocation7] sm:$0xff]
        %v321 = vld [vmem:[#allocation7 + $0x8] sm:$0xff]
        %v322 = vld [vmem:[#allocation7 + $0x10] sm:$0xff]
        %v323 = vld [vmem:[#allocation7 + $0x18] sm:$0xff]
        %v324 = vld [vmem:[#allocation7 + $0x20] sm:$0xff]
        %v325 = vld [vmem:[#allocation7 + $0x28] sm:$0xff]
        %v326 = vld [vmem:[#allocation7 + $0x30] sm:$0xff]
        %v327 = vld [vmem:[#allocation7 + $0x38] sm:$0xff]
        %v328 = vld [vmem:[#allocation7 + $0x40] sm:$0xff]
        %v329 = vld [vmem:[#allocation7 + $0x48] sm:$0xff]
        %v330 = vld [vmem:[#allocation7 + $0x50] sm:$0xff]
        %v331 = vld [vmem:[#allocation7 + $0x58] sm:$0xff]
        %v332 = vld [vmem:[#allocation7 + $0x60] sm:$0xff]
        %v333 = vld [vmem:[#allocation7 + $0x68] sm:$0xff]
        %v334 = vld [vmem:[#allocation7 + $0x70] sm:$0xff]
        %v335 = vld [vmem:[#allocation7 + $0x78] sm:$0xff]
        %v336 = vld [vmem:[#allocation7 + $0x80] sm:$0xff]
        %v337 = vld [vmem:[#allocation7 + $0x88] sm:$0xff]
        %v338 = vld [vmem:[#allocation7 + $0x90] sm:$0xff]
        %v339 = vld [vmem:[#allocation7 + $0x98] sm:$0xff]
        %v340 = vld [vmem:[#allocation7 + $0xa0] sm:$0xff]
        %v341 = vld [vmem:[#allocation7 + $0xa8] sm:$0xff]
        %v342 = vld [vmem:[#allocation7 + $0xb0] sm:$0xff]
        %v343 = vld [vmem:[#allocation7 + $0xb8] sm:$0xff]
        %v344 = vld [vmem:[#allocation7 + $0xc0] sm:$0xff]
        %v345 = vld [vmem:[#allocation7 + $0xc8] sm:$0xff]
        %v346 = vld [vmem:[#allocation7 + $0xd0] sm:$0xff]
        %v347 = vld [vmem:[#allocation7 + $0xd8] sm:$0xff]
        %v348 = vld [vmem:[#allocation7 + $0xe0] sm:$0xff]
        %v349 = vld [vmem:[#allocation7 + $0xe8] sm:$0xff]
        %v350 = vld [vmem:[#allocation7 + $0xf0] sm:$0xff]
        %v351 = vld [vmem:[#allocation7 + $0xf8] sm:$0xff]
        %v352 = vld [vmem:[#allocation7 + $0x100] sm:$0xff]
        %v353 = vld [vmem:[#allocation7 + $0x108] sm:$0xff]
        %v354 = vld [vmem:[#allocation7 + $0x110] sm:$0xff]
        %v355 = vld [vmem:[#allocation7 + $0x118] sm:$0xff]
        %v356 = vld [vmem:[#allocation7 + $0x120] sm:$0xff]
        %v357 = vld [vmem:[#allocation7 + $0x128] sm:$0xff]
        %v358 = vld [vmem:[#allocation7 + $0x130] sm:$0xff]
        %v359 = vld [vmem:[#allocation7 + $0x138] sm:$0xff]
        %v360 = vld [vmem:[#allocation7 + $0x140] sm:$0xff]
        %v361 = vld [vmem:[#allocation7 + $0x148] sm:$0xff]
        %v362 = vld [vmem:[#allocation7 + $0x150] sm:$0xff]
        %v363 = vld [vmem:[#allocation7 + $0x158] sm:$0xff]
        %v364 = vld [vmem:[#allocation7 + $0x160] sm:$0xff]
        %v365 = vld [vmem:[#allocation7 + $0x168] sm:$0xff]
        %v366 = vld [vmem:[#allocation7 + $0x170] sm:$0xff]
        %v367 = vld [vmem:[#allocation7 + $0x178] sm:$0xff]
        %v368 = vld [vmem:[%s2] sm:$0x1]
        %v370 = vperm.slane %v368, 0
        %372 = vmatpush.msra.mxu0 %v335
        %373 = vmatpush.msra.mxu0 %v334
        %374 = vmatpush.msra.mxu0 %v333
        %375 = vmatpush.msra.mxu0 %v332
        %376 = vmatpush.msra.mxu0 %v331
        %377 = vmatpush.msra.mxu0 %v330
        %378 = vmatpush.msra.mxu0 %v329
        %379 = vmatpush.msra.mxu0 %v328
        %380 = vmatpush.msra.mxu0 %v327
        %381 = vmatpush.msra.mxu0 %v326
        %382 = vmatpush.msra.mxu0 %v325
        %383 = vmatpush.msra.mxu0 %v324
        %384 = vmatpush.msra.mxu0 %v323
        %385 = vmatpush.msra.mxu0 %v322
        %386 = vmatpush.msra.mxu0 %v321
        %387 = vmatpush.msra.mxu0 %v320
        %388 = vmatmul.f32.gmra.mxu0 %v314
        %v389 = vpop.f32.mrf.mxu0
        %v390 = vadd.f32 %v370, %v389
        %391 = vmatmul.f32.gmra.mxu0 %v315
        %v392 = vpop.f32.mrf.mxu0
        %v393 = vadd.f32 %v370, %v392
        %394 = vdwg.mxu0
        %395 = vmatpush.msra.mxu0 %v351
        %396 = vmatpush.msra.mxu0 %v350
        %397 = vmatpush.msra.mxu0 %v349
        %398 = vmatpush.msra.mxu0 %v348
        %399 = vmatpush.msra.mxu0 %v347
        %400 = vmatpush.msra.mxu0 %v346
        %401 = vmatpush.msra.mxu0 %v345
        %402 = vmatpush.msra.mxu0 %v344
        %403 = vmatpush.msra.mxu0 %v343
        %404 = vmatpush.msra.mxu0 %v342
        %405 = vmatpush.msra.mxu0 %v341
        %406 = vmatpush.msra.mxu0 %v340
        %407 = vmatpush.msra.mxu0 %v339
        %408 = vmatpush.msra.mxu0 %v338
        %409 = vmatpush.msra.mxu0 %v337
        %410 = vmatpush.msra.mxu0 %v336
        %411 = vmatmul.f32.gmra.mxu0 %v316
        %v412 = vpop.f32.mrf.mxu0
        %v413 = vadd.f32 %v390, %v412
        %414 = vmatmul.f32.gmra.mxu0 %v317
        %v415 = vpop.f32.mrf.mxu0
        %v416 = vadd.f32 %v393, %v415
        %417 = vdwg.mxu0
        %418 = vmatpush.msra.mxu0 %v367
        %419 = vmatpush.msra.mxu0 %v366
        %420 = vmatpush.msra.mxu0 %v365
        %421 = vmatpush.msra.mxu0 %v364
        %422 = vmatpush.msra.mxu0 %v363
        %423 = vmatpush.msra.mxu0 %v362
        %424 = vmatpush.msra.mxu0 %v361
        %425 = vmatpush.msra.mxu0 %v360
        %426 = vmatpush.msra.mxu0 %v359
        %427 = vmatpush.msra.mxu0 %v358
        %428 = vmatpush.msra.mxu0 %v357
        %429 = vmatpush.msra.mxu0 %v356
        %430 = vmatpush.msra.mxu0 %v355
        %431 = vmatpush.msra.mxu0 %v354
        %432 = vmatpush.msra.mxu0 %v353
        %433 = vmatpush.msra.mxu0 %v352
        %434 = vmatmul.f32.gmra.mxu0 %v318
        %v435 = vpop.f32.mrf.mxu0
        %v436 = vadd.f32 %v413, %v435
        %437 = vmatmul.f32.gmra.mxu0 %v319
        %v438 = vpop.f32.mrf.mxu0
        %v439 = vadd.f32 %v416, %v438
        %440 = vdwg.mxu0
        %v441 = vadd.f32 %v436, %v304
        %v442 = vadd.f32 %v439, %v305
        %vm443 = vcmp.gt.f32.partialorder %v441, 0.0
        %vm444 = vcmp.gt.f32.partialorder %v442, 0.0
        %v445 = vmul.f32 %v441, 0.1
        %v446 = vmul.f32 %v442, 0.1
        %v447 = vsel %vm443, %v441, %v445
        %v448 = vsel %vm444, %v442, %v446
        %449 = vst [vmem:[#allocation3 + $0x8] sm:$0xff] %v447
        %450 = vst [vmem:[#allocation3 + $0x10] sm:$0xff] %v448
        %v451 = vld [vmem:[#allocation3 + $0x2] sm:$0xff]
        %v452 = vld [vmem:[#allocation3 + $0xa] sm:$0xff]
        %v453 = vld [vmem:[#allocation3 + $0x5] sm:$0xff]
        %v454 = vld [vmem:[#allocation3 + $0xd] sm:$0xff]
        %v455 = vld [vmem:[#allocation3 + $0x8] sm:$0xff]
        %v456 = vld [vmem:[#allocation3 + $0x10] sm:$0xff]
        %v457 = vld [vmem:[#allocation9] sm:$0xff]
        %v458 = vld [vmem:[#allocation9 + $0x8] sm:$0xff]
        %v459 = vld [vmem:[#allocation9 + $0x10] sm:$0xff]
        %v460 = vld [vmem:[#allocation9 + $0x18] sm:$0xff]
        %v461 = vld [vmem:[#allocation9 + $0x20] sm:$0xff]
        %v462 = vld [vmem:[#allocation9 + $0x28] sm:$0xff]
        %v463 = vld [vmem:[#allocation9 + $0x30] sm:$0xff]
        %v464 = vld [vmem:[#allocation9 + $0x38] sm:$0xff]
        %v465 = vld [vmem:[#allocation9 + $0x40] sm:$0xff]
        %v466 = vld [vmem:[#allocation9 + $0x48] sm:$0xff]
        %v467 = vld [vmem:[#allocation9 + $0x50] sm:$0xff]
        %v468 = vld [vmem:[#allocation9 + $0x58] sm:$0xff]
        %v469 = vld [vmem:[#allocation9 + $0x60] sm:$0xff]
        %v470 = vld [vmem:[#allocation9 + $0x68] sm:$0xff]
        %v471 = vld [vmem:[#allocation9 + $0x70] sm:$0xff]
        %v472 = vld [vmem:[#allocation9 + $0x78] sm:$0xff]
        %v473 = vld [vmem:[#allocation9 + $0x80] sm:$0xff]
        %v474 = vld [vmem:[#allocation9 + $0x88] sm:$0xff]
        %v475 = vld [vmem:[#allocation9 + $0x90] sm:$0xff]
        %v476 = vld [vmem:[#allocation9 + $0x98] sm:$0xff]
        %v477 = vld [vmem:[#allocation9 + $0xa0] sm:$0xff]
        %v478 = vld [vmem:[#allocation9 + $0xa8] sm:$0xff]
        %v479 = vld [vmem:[#allocation9 + $0xb0] sm:$0xff]
        %v480 = vld [vmem:[#allocation9 + $0xb8] sm:$0xff]
        %v481 = vld [vmem:[#allocation9 + $0xc0] sm:$0xff]
        %v482 = vld [vmem:[#allocation9 + $0xc8] sm:$0xff]
        %v483 = vld [vmem:[#allocation9 + $0xd0] sm:$0xff]
        %v484 = vld [vmem:[#allocation9 + $0xd8] sm:$0xff]
        %v485 = vld [vmem:[#allocation9 + $0xe0] sm:$0xff]
        %v486 = vld [vmem:[#allocation9 + $0xe8] sm:$0xff]
        %v487 = vld [vmem:[#allocation9 + $0xf0] sm:$0xff]
        %v488 = vld [vmem:[#allocation9 + $0xf8] sm:$0xff]
        %v489 = vld [vmem:[#allocation9 + $0x100] sm:$0xff]
        %v490 = vld [vmem:[#allocation9 + $0x108] sm:$0xff]
        %v491 = vld [vmem:[#allocation9 + $0x110] sm:$0xff]
        %v492 = vld [vmem:[#allocation9 + $0x118] sm:$0xff]
        %v493 = vld [vmem:[#allocation9 + $0x120] sm:$0xff]
        %v494 = vld [vmem:[#allocation9 + $0x128] sm:$0xff]
        %v495 = vld [vmem:[#allocation9 + $0x130] sm:$0xff]
        %v496 = vld [vmem:[#allocation9 + $0x138] sm:$0xff]
        %v497 = vld [vmem:[#allocation9 + $0x140] sm:$0xff]
        %v498 = vld [vmem:[#allocation9 + $0x148] sm:$0xff]
        %v499 = vld [vmem:[#allocation9 + $0x150] sm:$0xff]
        %v500 = vld [vmem:[#allocation9 + $0x158] sm:$0xff]
        %v501 = vld [vmem:[#allocation9 + $0x160] sm:$0xff]
        %v502 = vld [vmem:[#allocation9 + $0x168] sm:$0xff]
        %v503 = vld [vmem:[#allocation9 + $0x170] sm:$0xff]
        %v504 = vld [vmem:[#allocation9 + $0x178] sm:$0xff]
        %v505 = vld [vmem:[%s4] sm:$0x1]
        %v507 = vperm.slane %v505, 0
        %509 = vmatpush.msra.mxu0 %v472
        %510 = vmatpush.msra.mxu0 %v471
        %511 = vmatpush.msra.mxu0 %v470
        %512 = vmatpush.msra.mxu0 %v469
        %513 = vmatpush.msra.mxu0 %v468
        %514 = vmatpush.msra.mxu0 %v467
        %515 = vmatpush.msra.mxu0 %v466
        %516 = vmatpush.msra.mxu0 %v465
        %517 = vmatpush.msra.mxu0 %v464
        %518 = vmatpush.msra.mxu0 %v463
        %519 = vmatpush.msra.mxu0 %v462
        %520 = vmatpush.msra.mxu0 %v461
        %521 = vmatpush.msra.mxu0 %v460
        %522 = vmatpush.msra.mxu0 %v459
        %523 = vmatpush.msra.mxu0 %v458
        %524 = vmatpush.msra.mxu0 %v457
        %525 = vmatmul.f32.gmra.mxu0 %v451
        %v526 = vpop.f32.mrf.mxu0
        %v527 = vadd.f32 %v507, %v526
        %528 = vmatmul.f32.gmra.mxu0 %v452
        %v529 = vpop.f32.mrf.mxu0
        %v530 = vadd.f32 %v507, %v529
        %531 = vdwg.mxu0
        %532 = vmatpush.msra.mxu0 %v488
        %533 = vmatpush.msra.mxu0 %v487
        %534 = vmatpush.msra.mxu0 %v486
        %535 = vmatpush.msra.mxu0 %v485
        %536 = vmatpush.msra.mxu0 %v484
        %537 = vmatpush.msra.mxu0 %v483
        %538 = vmatpush.msra.mxu0 %v482
        %539 = vmatpush.msra.mxu0 %v481
        %540 = vmatpush.msra.mxu0 %v480
        %541 = vmatpush.msra.mxu0 %v479
        %542 = vmatpush.msra.mxu0 %v478
        %543 = vmatpush.msra.mxu0 %v477
        %544 = vmatpush.msra.mxu0 %v476
        %545 = vmatpush.msra.mxu0 %v475
        %546 = vmatpush.msra.mxu0 %v474
        %547 = vmatpush.msra.mxu0 %v473
        %548 = vmatmul.f32.gmra.mxu0 %v453
        %v549 = vpop.f32.mrf.mxu0
        %v550 = vadd.f32 %v527, %v549
        %551 = vmatmul.f32.gmra.mxu0 %v454
        %v552 = vpop.f32.mrf.mxu0
        %v553 = vadd.f32 %v530, %v552
        %554 = vdwg.mxu0
        %555 = vmatpush.msra.mxu0 %v504
        %556 = vmatpush.msra.mxu0 %v503
        %557 = vmatpush.msra.mxu0 %v502
        %558 = vmatpush.msra.mxu0 %v501
        %559 = vmatpush.msra.mxu0 %v500
        %560 = vmatpush.msra.mxu0 %v499
        %561 = vmatpush.msra.mxu0 %v498
        %562 = vmatpush.msra.mxu0 %v497
        %563 = vmatpush.msra.mxu0 %v496
        %564 = vmatpush.msra.mxu0 %v495
        %565 = vmatpush.msra.mxu0 %v494
        %566 = vmatpush.msra.mxu0 %v493
        %567 = vmatpush.msra.mxu0 %v492
        %568 = vmatpush.msra.mxu0 %v491
        %569 = vmatpush.msra.mxu0 %v490
        %570 = vmatpush.msra.mxu0 %v489
        %571 = vmatmul.f32.gmra.mxu0 %v455
        %v572 = vpop.f32.mrf.mxu0
        %v573 = vadd.f32 %v550, %v572
        %574 = vmatmul.f32.gmra.mxu0 %v456
        %v575 = vpop.f32.mrf.mxu0
        %v576 = vadd.f32 %v553, %v575
        %577 = vdwg.mxu0
        %v578 = vadd.f32 %v573, %v441
        %v579 = vadd.f32 %v576, %v442
        %v580 = vld [vmem:[#allocation2 + $0x10] sm:$0xff]
        %581 = vst [vmem:[#allocation2] sm:$0xff] %v580
        %v582 = vld [vmem:[#allocation3 + $0x10] sm:$0xff]
        %583 = vst [vmem:[#allocation3] sm:$0xff] %v582
        %584 = vst [vmem:[%s295] sm:$0xff] %v578
        %585 = vst [vmem:[%s295 + $0x8] sm:$0xff] %v579
        %s586 = sand.u32 %s157, 1
        %s587 = scalar_lea.sflag [#allocation6], %s586
        %s588 = sand.u32 %s157, 1
        %s589 = smul.addr %s588, 16
        %s590 = scalar_lea.vmem [#allocation10], %s589
        // Predicated region
        $region57: #{tpu_custom_call.1} parent=39 // pred_check
          %p591 = pneg %p167
        $region58: #{tpu_custom_call.1} parent=39 // pred_check_branch
          %593 = sbr.rel (%p591) target = $region60
        $region59: #{tpu_custom_call.1} parent=39 // pred_region
          %s594 = smul.u32 2, %s28
          %596 = vsyncadd %s587, 0
          %s597 = smul.addr %s27, 8
          %s598 = sadd.s32 %s594, %s597
          %s599 = smul.addr %s598, 8
          %s600 = scalar_lea.hbm %s5, %s599
          %s601 = sshll.u32 %s590, 4
          %s602 = int_to_ptr.vmem [resolvable:$true] %s601
          %s603 = sshll.u32 %s600, 4
          %s604 = int_to_ptr.hbm [resolvable:$true] %s603
          %609 = dma.vmem_to_hbm [thread:$0]  %s602, 256, %s604, %s587, 128, 128, 8
        $region60: #{tpu_custom_call.1} parent=39 // pred_fallthru
          _
      $region40: #{tpu_custom_call.1} parent=5 // pred_fallthru
        _
      %p610 = scmp.le.s32.totalorder 2, %s18
      // Predicated region
      $region61: #{tpu_custom_call.1} parent=5 // pred_check
        %p611 = pneg %p610
      $region62: #{tpu_custom_call.1} parent=5 // pred_check_branch
        %613 = sbr.rel (%p611) target = $region64
      $region63: #{tpu_custom_call.1} parent=5 // pred_region
        %s614 = ssub.s32 %s18, 2
        // Predicated region
        $region65: #{tpu_custom_call.1} parent=63 // pred_check
          %p615 = pneg %p173
        $region66: #{tpu_custom_call.1} parent=63 // pred_check_branch
          %617 = sbr.rel (%p615) target = $region68
        $region67: #{tpu_custom_call.1} parent=63 // pred_region
          %s618 = sand.u32 %s158, 1
          %s619 = scalar_lea.sflag [#allocation6], %s618
          %s620 = sand.u32 %s158, 1
          %s621 = smul.addr %s620, 16
          %s622 = scalar_lea.vmem [#allocation10], %s621
          %624 = dma.done %s619, 256
        $region68: #{tpu_custom_call.1} parent=63 // pred_fallthru
          _
      $region64: #{tpu_custom_call.1} parent=5 // pred_fallthru
        _
    $region6: #{tpu_custom_call.1} parent=1 // loop_footer
      %s22 = sadd.s32 1, %s18
    $region7: #{tpu_custom_call.1} parent=1 // loop_footer_branch
      %17 = sbr.rel target = $region3
    $region8: #{tpu_custom_call.1} parent=1 // loop_exit
      _
    %625 = vsyncpa [#allocation5], 1
    %s626 = scalar_lea.sflag [#allocation5], 1
    %627 = vsyncpa %s626, 1
    %628 = vsyncpa [#allocation8], 1
    %629 = vsyncpa [#allocation6], 1
    %s630 = scalar_lea.sflag [#allocation6], 1
    %631 = vsyncpa %s630, 1

</llo_original>
